<compile_context>
chip_gen: v7x
topology: tpu7x:2x2x1
jax: 0.10.0
libtpu: 0.0.40
codegen_flags: <defaults>
</compile_context>

<pallas_src>
import jax
import jax.numpy as jnp
from jax.experimental import pallas as pl
from jax.experimental.pallas import tpu as pltpu


def _round_up(v, m):
    return ((v + m - 1) // m) * m


def _make_kernel(compute_dtype):
    def _mlp_kernel(x_ref,
                    w1_ref, b1_ref,
                    w2_ref, b2_ref,
                    w3_ref, b3_ref,
                    w4_ref, b4_ref,
                    o_ref):
        # x tile: (6, TN) -- features on sublanes, batch on lanes.
        x = x_ref[...].astype(compute_dtype)

        # fc1: (32, 6) @ (6, TN) -> (32, TN); f32 accumulation on the MXU.
        h = jnp.dot(w1_ref[...], x, preferred_element_type=jnp.float32)
        h = jnp.maximum(h + b1_ref[...], 0.0)

        # fc2: (64, 32) @ (32, TN) -> (64, TN)
        h = jnp.dot(w2_ref[...], h.astype(compute_dtype),
                    preferred_element_type=jnp.float32)
        h = jnp.maximum(h + b2_ref[...], 0.0)

        # fc3: (32, 64) @ (64, TN) -> (32, TN)
        h = jnp.dot(w3_ref[...], h.astype(compute_dtype),
                    preferred_element_type=jnp.float32)
        h = jnp.maximum(h + b3_ref[...], 0.0)

        # fc4: (6, 32) @ (32, TN) -> (6, TN)
        h = jnp.dot(w4_ref[...], h.astype(compute_dtype),
                    preferred_element_type=jnp.float32)
        h = h + b4_ref[...]

        o_ref[...] = h.astype(o_ref.dtype)

    return _mlp_kernel


def _default_tile_n(n):
    """Balanced, lane-dense batch tiles.

    - blocks near 4096 lanes (>=2048 for large N -> per-step overhead and
      stationary-weight reloads amortized),
    - >= 2 blocks whenever there is more than one 128-lane group (v7x has two
      TensorCores; a single block would leave one idle),
    - balanced sizes so the last block is not mostly zero padding.
    """
    n128 = max(_round_up(n, 128), 128)
    n_blocks = max(pl.cdiv(n128, 4096), 2 if n128 > 128 else 1)
    return _round_up(pl.cdiv(n128, n_blocks), 128)


def cbb_linear_forward_t(xt, params, tile_n=None, use_bf16=False):
    """Fast path: feature-major layout end-to-end (no wrapper transposes).

    xt: (6, N) float32.  Returns (6, N) float32.
    params: PyTorch-native layouts -- w_i: (out, in), b_i: (out, 1).
    use_bf16: stream bf16 MXU operands with f32 accumulation (~2-4x faster,
      ~1e-2-relative accuracy vs. the f32 reference).
    """
    assert xt.shape[0] == 6, xt.shape
    n = xt.shape[1]

    if tile_n is None:
        tile_n = _default_tile_n(n)
    else:
        # Lane-dense tiles only: force a multiple of 128 (otherwise BlockSpec
        # lane divisibility fails / stores fall into masked vst.msk paths).
        tile_n = max(_round_up(int(tile_n), 128), 128)

    n_blocks = pl.cdiv(n, tile_n)
    n_pad = n_blocks * tile_n
    if n_pad != n:
        # Padded tail columns compute garbage that is sliced off below; never
        # read the raw kernel output beyond column n.
        xt = jnp.pad(xt, ((0, 0), (0, n_pad - n)))

    compute_dtype = jnp.bfloat16 if use_bf16 else jnp.float32

    def _w(name):
        w = params[name]
        return w.astype(compute_dtype) if use_bf16 else w

    x_spec = pl.BlockSpec((6, tile_n), lambda i: (0, i))
    o_spec = pl.BlockSpec((6, tile_n), lambda i: (0, i))

    def _const_spec(shape):
        # Full-extent block, constant index_map: DMA'd once, VMEM-resident
        # across the whole grid.
        return pl.BlockSpec(shape, lambda i: (0, 0))

    in_specs = [
        x_spec,
        _const_spec((32, 6)), _const_spec((32, 1)),
        _const_spec((64, 32)), _const_spec((64, 1)),
        _const_spec((32, 64)), _const_spec((32, 1)),
        _const_spec((6, 32)), _const_spec((6, 1)),
    ]

    out_t = pl.pallas_call(
        _make_kernel(compute_dtype),
        out_shape=jax.ShapeDtypeStruct((6, n_pad), jnp.float32),
        grid=(n_blocks,),
        in_specs=in_specs,
        out_specs=o_spec,
        compiler_params=pltpu.CompilerParams(
            dimension_semantics=("parallel",),
            # VMEM is nowhere near binding here; 32 MiB also overrides v5e's
            # 16 MiB scoped default.
            vmem_limit_bytes=32 << 20,
        ),
    )(xt,
      _w("w1"), params["b1"],
      _w("w2"), params["b2"],
      _w("w3"), params["b3"],
      _w("w4"), params["b4"])

    return out_t[:, :n]


def cbb_linear_forward(x, params, tile_n=None, use_bf16=False):
    """PyTorch-layout compat wrapper: x (N, 6) -> (N, 6).

    NOTE: the two .T relayouts here are separate bandwidth-bound XLA ops;
    prefer cbb_linear_forward_t for the transpose-free fast path.
    """
    out_t = cbb_linear_forward_t(x.T, params, tile_n=tile_n, use_bf16=use_bf16)
    return out_t.T


def init_params(key):
    """Deterministic init matching nn.Linear: w (out, in), b (out, 1)."""
    sizes = [(6, 32), (32, 64), (64, 32), (32, 6)]
    params = {}
    for i, (fan_in, fan_out) in enumerate(sizes, start=1):
        key, kw, kb = jax.random.split(key, 3)
        bound = 1.0 / jnp.sqrt(fan_in)
        params[f"w{i}"] = jax.random.uniform(
            kw, (fan_out, fan_in), jnp.float32, -bound, bound)
        params[f"b{i}"] = jax.random.uniform(
            kb, (fan_out, 1), jnp.float32, -bound, bound)
    return params


def _reference(x, p):
    h = jnp.maximum(x @ p["w1"].T + p["b1"].T, 0.0)
    h = jnp.maximum(h @ p["w2"].T + p["b2"].T, 0.0)
    h = jnp.maximum(h @ p["w3"].T + p["b3"].T, 0.0)
    return h @ p["w4"].T + p["b4"].T


if __name__ == "__main__":
    key = jax.random.PRNGKey(0)
    key, kx, kx2 = jax.random.split(key, 3)
    params = init_params(key)

    # 1) PyTorch-layout compat path, exact f32 parity (single 128-lane block).
    x = jax.random.normal(kx, (8, 6), jnp.float32)
    out = jax.block_until_ready(cbb_linear_forward(x, params))
    ref = _reference(x, params)
    assert out.shape == (8, 6)
    assert jnp.allclose(out, ref, atol=1e-5, rtol=1e-5)

    # 2) Feature-major fast path, kept (6, N) end-to-end (no wrapper
    #    transposes).  Ragged N=300 -> balanced heuristic picks tile_n=256,
    #    2 blocks: exercises the grid and the v7x >=2-block rule.
    xt2 = jax.random.normal(kx2, (6, 300), jnp.float32)
    out2_t = jax.block_until_ready(cbb_linear_forward_t(xt2, params))
    ref2_t = _reference(xt2.T, params).T
    assert out2_t.shape == (6, 300)
    assert jnp.allclose(out2_t, ref2_t, atol=1e-5, rtol=1e-5)

    # 3) bf16 MXU-operand fast path (flag-gated), checked at a loose tolerance
    #    (bf16 operand rounding is ~1e-2 relative).
    out3_t = jax.block_until_ready(
        cbb_linear_forward_t(xt2, params, use_bf16=True))
    assert jnp.allclose(out3_t, ref2_t, atol=1e-1, rtol=1e-1)

    print("KERNEL_OK")
</pallas_src>

<mosaic_0001>
module attributes {stable_mosaic.version = 11 : i64} {
  func.func @_mlp_kernel(%arg0: i32, %arg1: memref<6x128xf32, #tpu.memory_space<vmem>>, %arg2: memref<32x6xf32, #tpu.memory_space<vmem>>, %arg3: memref<32x1xf32, #tpu.memory_space<vmem>>, %arg4: memref<64x32xf32, #tpu.memory_space<vmem>>, %arg5: memref<64x1xf32, #tpu.memory_space<vmem>>, %arg6: memref<32x64xf32, #tpu.memory_space<vmem>>, %arg7: memref<32x1xf32, #tpu.memory_space<vmem>>, %arg8: memref<6x32xf32, #tpu.memory_space<vmem>>, %arg9: memref<6x1xf32, #tpu.memory_space<vmem>>, %arg10: memref<6x128xf32, #tpu.memory_space<vmem>>) attributes {dimension_semantics = [#tpu.dimension_semantics<parallel>], iteration_bounds = array<i64: 1>, scalar_prefetch = 0 : i64, scratch_operands = 0 : i64, tpu.core_type = #tpu.core_type<tc>, window_params = [{transform_indices = @transform_0, window_bounds = array<i64: 6, 128>}, {pipeline_mode = #tpu.pipeline_mode<synchronous>, transform_indices = @transform_1, window_bounds = array<i64: 32, 6>}, {pipeline_mode = #tpu.pipeline_mode<synchronous>, transform_indices = @transform_2, window_bounds = array<i64: 32, 1>}, {pipeline_mode = #tpu.pipeline_mode<synchronous>, transform_indices = @transform_3, window_bounds = array<i64: 64, 32>}, {pipeline_mode = #tpu.pipeline_mode<synchronous>, transform_indices = @transform_4, window_bounds = array<i64: 64, 1>}, {pipeline_mode = #tpu.pipeline_mode<synchronous>, transform_indices = @transform_5, window_bounds = array<i64: 32, 64>}, {pipeline_mode = #tpu.pipeline_mode<synchronous>, transform_indices = @transform_6, window_bounds = array<i64: 32, 1>}, {pipeline_mode = #tpu.pipeline_mode<synchronous>, transform_indices = @transform_7, window_bounds = array<i64: 6, 32>}, {pipeline_mode = #tpu.pipeline_mode<synchronous>, transform_indices = @transform_8, window_bounds = array<i64: 6, 1>}, {transform_indices = @transform_9, window_bounds = array<i64: 6, 128>}]} {
    %c0 = arith.constant 0 : index
    %c0_0 = arith.constant 0 : index
    %0 = vector.load %arg1[%c0, %c0_0] : memref<6x128xf32, #tpu.memory_space<vmem>>, vector<6x128xf32>
    %c0_1 = arith.constant 0 : index
    %c0_2 = arith.constant 0 : index
    %1 = vector.load %arg2[%c0_1, %c0_2] : memref<32x6xf32, #tpu.memory_space<vmem>>, vector<32x6xf32>
    %cst = arith.constant dense<0.000000e+00> : vector<32x128xf32>
    %2 = tpu.matmul %1, %0, %cst {dimension_numbers = #tpu.dot_dimension_numbers<[1], [0], [0], [1], [0, 0, 1, 1], [], []>} : vector<32x6xf32>, vector<6x128xf32>, vector<32x128xf32> -> vector<32x128xf32>
    %c0_3 = arith.constant 0 : index
    %c0_4 = arith.constant 0 : index
    %3 = vector.load %arg3[%c0_3, %c0_4] : memref<32x1xf32, #tpu.memory_space<vmem>>, vector<32x1xf32>
    %4 = vector.broadcast %3 : vector<32x1xf32> to vector<32x128xf32>
    %5 = arith.addf %2, %4 : vector<32x128xf32>
    %cst_5 = arith.constant 0.000000e+00 : f32
    %6 = vector.broadcast %cst_5 : f32 to vector<32x128xf32>
    %7 = arith.maximumf %5, %6 : vector<32x128xf32>
    %c0_6 = arith.constant 0 : index
    %c0_7 = arith.constant 0 : index
    %8 = vector.load %arg4[%c0_6, %c0_7] : memref<64x32xf32, #tpu.memory_space<vmem>>, vector<64x32xf32>
    %cst_8 = arith.constant dense<0.000000e+00> : vector<64x128xf32>
    %9 = tpu.matmul %8, %7, %cst_8 {dimension_numbers = #tpu.dot_dimension_numbers<[1], [0], [0], [1], [0, 0, 1, 1], [], []>} : vector<64x32xf32>, vector<32x128xf32>, vector<64x128xf32> -> vector<64x128xf32>
    %c0_9 = arith.constant 0 : index
    %c0_10 = arith.constant 0 : index
    %10 = vector.load %arg5[%c0_9, %c0_10] : memref<64x1xf32, #tpu.memory_space<vmem>>, vector<64x1xf32>
    %11 = vector.broadcast %10 : vector<64x1xf32> to vector<64x128xf32>
    %12 = arith.addf %9, %11 : vector<64x128xf32>
    %cst_11 = arith.constant 0.000000e+00 : f32
    %13 = vector.broadcast %cst_11 : f32 to vector<64x128xf32>
    %14 = arith.maximumf %12, %13 : vector<64x128xf32>
    %c0_12 = arith.constant 0 : index
    %c0_13 = arith.constant 0 : index
    %15 = vector.load %arg6[%c0_12, %c0_13] : memref<32x64xf32, #tpu.memory_space<vmem>>, vector<32x64xf32>
    %cst_14 = arith.constant dense<0.000000e+00> : vector<32x128xf32>
    %16 = tpu.matmul %15, %14, %cst_14 {dimension_numbers = #tpu.dot_dimension_numbers<[1], [0], [0], [1], [0, 0, 1, 1], [], []>} : vector<32x64xf32>, vector<64x128xf32>, vector<32x128xf32> -> vector<32x128xf32>
    %c0_15 = arith.constant 0 : index
    %c0_16 = arith.constant 0 : index
    %17 = vector.load %arg7[%c0_15, %c0_16] : memref<32x1xf32, #tpu.memory_space<vmem>>, vector<32x1xf32>
    %18 = vector.broadcast %17 : vector<32x1xf32> to vector<32x128xf32>
    %19 = arith.addf %16, %18 : vector<32x128xf32>
    %cst_17 = arith.constant 0.000000e+00 : f32
    %20 = vector.broadcast %cst_17 : f32 to vector<32x128xf32>
    %21 = arith.maximumf %19, %20 : vector<32x128xf32>
    %c0_18 = arith.constant 0 : index
    %c0_19 = arith.constant 0 : index
    %22 = vector.load %arg8[%c0_18, %c0_19] : memref<6x32xf32, #tpu.memory_space<vmem>>, vector<6x32xf32>
    %cst_20 = arith.constant dense<0.000000e+00> : vector<6x128xf32>
    %23 = tpu.matmul %22, %21, %cst_20 {dimension_numbers = #tpu.dot_dimension_numbers<[1], [0], [0], [1], [0, 0, 1, 1], [], []>} : vector<6x32xf32>, vector<32x128xf32>, vector<6x128xf32> -> vector<6x128xf32>
    %c0_21 = arith.constant 0 : index
    %c0_22 = arith.constant 0 : index
    %24 = vector.load %arg9[%c0_21, %c0_22] : memref<6x1xf32, #tpu.memory_space<vmem>>, vector<6x1xf32>
    %25 = vector.broadcast %24 : vector<6x1xf32> to vector<6x128xf32>
    %26 = arith.addf %23, %25 : vector<6x128xf32>
    %c0_23 = arith.constant 0 : index
    %c0_24 = arith.constant 0 : index
    %27 = vector.load %arg10[%c0_23, %c0_24] : memref<6x128xf32, #tpu.memory_space<vmem>>, vector<6x128xf32>
    tpu.vector_store %arg10[%c0_23, %c0_24], %26 {strides = array<i32>} : memref<6x128xf32, #tpu.memory_space<vmem>>, vector<6x128xf32>,
    return
  }
  func.func @transform_0(%arg0: i32) -> (i32, i32) {
    %c0_i32 = arith.constant 0 : i32
    %c0_i32_0 = arith.constant 0 : i32
    return %c0_i32, %arg0 : i32, i32
  }
  func.func @transform_1(%arg0: i32) -> (i32, i32) {
    %c0_i32 = arith.constant 0 : i32
    %c0_i32_0 = arith.constant 0 : i32
    %c0_i32_1 = arith.constant 0 : i32
    return %c0_i32, %c0_i32_0 : i32, i32
  }
  func.func @transform_2(%arg0: i32) -> (i32, i32) {
    %c0_i32 = arith.constant 0 : i32
    %c0_i32_0 = arith.constant 0 : i32
    %c0_i32_1 = arith.constant 0 : i32
    return %c0_i32, %c0_i32_0 : i32, i32
  }
  func.func @transform_3(%arg0: i32) -> (i32, i32) {
    %c0_i32 = arith.constant 0 : i32
    %c0_i32_0 = arith.constant 0 : i32
    %c0_i32_1 = arith.constant 0 : i32
    return %c0_i32, %c0_i32_0 : i32, i32
  }
  func.func @transform_4(%arg0: i32) -> (i32, i32) {
    %c0_i32 = arith.constant 0 : i32
    %c0_i32_0 = arith.constant 0 : i32
    %c0_i32_1 = arith.constant 0 : i32
    return %c0_i32, %c0_i32_0 : i32, i32
  }
  func.func @transform_5(%arg0: i32) -> (i32, i32) {
    %c0_i32 = arith.constant 0 : i32
    %c0_i32_0 = arith.constant 0 : i32
    %c0_i32_1 = arith.constant 0 : i32
    return %c0_i32, %c0_i32_0 : i32, i32
  }
  func.func @transform_6(%arg0: i32) -> (i32, i32) {
    %c0_i32 = arith.constant 0 : i32
    %c0_i32_0 = arith.constant 0 : i32
    %c0_i32_1 = arith.constant 0 : i32
    return %c0_i32, %c0_i32_0 : i32, i32
  }
  func.func @transform_7(%arg0: i32) -> (i32, i32) {
    %c0_i32 = arith.constant 0 : i32
    %c0_i32_0 = arith.constant 0 : i32
    %c0_i32_1 = arith.constant 0 : i32
    return %c0_i32, %c0_i32_0 : i32, i32
  }
  func.func @transform_8(%arg0: i32) -> (i32, i32) {
    %c0_i32 = arith.constant 0 : i32
    %c0_i32_0 = arith.constant 0 : i32
    %c0_i32_1 = arith.constant 0 : i32
    return %c0_i32, %c0_i32_0 : i32, i32
  }
  func.func @transform_9(%arg0: i32) -> (i32, i32) {
    %c0_i32 = arith.constant 0 : i32
    %c0_i32_0 = arith.constant 0 : i32
    return %c0_i32, %arg0 : i32, i32
  }
}

</mosaic_0001>

<llo_original>
// kernel: tpu_custom_call.1
$region0: #{tpu_custom_call.1}
  #allocation0 [shape = 'u32[]', space=smem, size = 0x4, offset = 0x4, fixed_abs, tag = 'smem constant byte address 0x4 - core index']
  #allocation1 [shape = 'u32[144,128]{1,0:T(1,128)}', space=vmem, size = 0x12000, scoped, tag = 'internal scratch']
  %s0 = inlined_call_operand.vmem [shape: f32[6,128], index: 0, kind: input, shape index: {}]
  %s1 = inlined_call_operand.vmem [shape: f32[32,6], index: 1, kind: input, shape index: {}]
  %s2 = inlined_call_operand.vmem [shape: f32[32,1], index: 2, kind: input, shape index: {}]
  %s3 = inlined_call_operand.vmem [shape: f32[64,32], index: 3, kind: input, shape index: {}]
  %s4 = inlined_call_operand.vmem [shape: f32[64,1], index: 4, kind: input, shape index: {}]
  %s5 = inlined_call_operand.vmem [shape: f32[32,64], index: 5, kind: input, shape index: {}]
  %s6 = inlined_call_operand.vmem [shape: f32[32,1], index: 6, kind: input, shape index: {}]
  %s7 = inlined_call_operand.vmem [shape: f32[6,32], index: 7, kind: input, shape index: {}]
  %s8 = inlined_call_operand.vmem [shape: f32[6,1], index: 8, kind: input, shape index: {}]
  %s9 = inlined_call_operand.hbm [shape: f32[6,128], index: 9, kind: output, shape index: {}]
  %s10 = sld [smem:[#allocation0]]
  $region46: #{tpu_custom_call.1} parent=0
    _
  %s12 = ssub.s32 1, %s10
  %s13 = scalar_select 0, %s12, %s10
  $region1: #{tpu_custom_call.1} parent=0
    #allocation2 [shape = 'u8[4096]{0}', space=vmem, size = 0x1000, scoped, tag = 'output window, operand 0, single buffered']
    #allocation3 [shape = 's32[1]{0}', space=sflag, size = 0x4, scoped, tag = 'scoped memory for tpu_custom_call.1']
    %14 = vsyncpa [#allocation3], 0
    // Predicated region
    $region2: #{tpu_custom_call.1} parent=1 // pred_check
      _
    $region3: #{tpu_custom_call.1} parent=1 // pred_check_branch
      %16 = sbr.rel (0) target = $region5
    $region4: #{tpu_custom_call.1} parent=1 // pred_region
      _
    $region5: #{tpu_custom_call.1} parent=1 // pred_fallthru
      _
    // Predicated region
    $region6: #{tpu_custom_call.1} parent=1 // pred_check
      _
    $region7: #{tpu_custom_call.1} parent=1 // pred_check_branch
      %18 = sbr.rel (0) target = $region9
    $region8: #{tpu_custom_call.1} parent=1 // pred_region
      _
    $region9: #{tpu_custom_call.1} parent=1 // pred_fallthru
      _
    // Predicated region
    $region10: #{tpu_custom_call.1} parent=1 // pred_check
      _
    $region11: #{tpu_custom_call.1} parent=1 // pred_check_branch
      %20 = sbr.rel (0) target = $region13
    $region12: #{tpu_custom_call.1} parent=1 // pred_region
      _
    $region13: #{tpu_custom_call.1} parent=1 // pred_fallthru
      _
    // Predicated region
    $region14: #{tpu_custom_call.1} parent=1 // pred_check
      _
    $region15: #{tpu_custom_call.1} parent=1 // pred_check_branch
      %22 = sbr.rel (0) target = $region17
    $region16: #{tpu_custom_call.1} parent=1 // pred_region
      _
    $region17: #{tpu_custom_call.1} parent=1 // pred_fallthru
      _
    // Predicated region
    $region18: #{tpu_custom_call.1} parent=1 // pred_check
      _
    $region19: #{tpu_custom_call.1} parent=1 // pred_check_branch
      %24 = sbr.rel (0) target = $region21
    $region20: #{tpu_custom_call.1} parent=1 // pred_region
      _
    $region21: #{tpu_custom_call.1} parent=1 // pred_fallthru
      _
    // Predicated region
    $region22: #{tpu_custom_call.1} parent=1 // pred_check
      _
    $region23: #{tpu_custom_call.1} parent=1 // pred_check_branch
      %26 = sbr.rel (0) target = $region25
    $region24: #{tpu_custom_call.1} parent=1 // pred_region
      _
    $region25: #{tpu_custom_call.1} parent=1 // pred_fallthru
      _
    // Predicated region
    $region26: #{tpu_custom_call.1} parent=1 // pred_check
      _
    $region27: #{tpu_custom_call.1} parent=1 // pred_check_branch
      %28 = sbr.rel (0) target = $region29
    $region28: #{tpu_custom_call.1} parent=1 // pred_region
      _
    $region29: #{tpu_custom_call.1} parent=1 // pred_fallthru
      _
    // Predicated region
    $region30: #{tpu_custom_call.1} parent=1 // pred_check
      _
    $region31: #{tpu_custom_call.1} parent=1 // pred_check_branch
      %30 = sbr.rel (0) target = $region33
    $region32: #{tpu_custom_call.1} parent=1 // pred_region
      _
    $region33: #{tpu_custom_call.1} parent=1 // pred_fallthru
      _
    // Predicated region
    $region34: #{tpu_custom_call.1} parent=1 // pred_check
      _
    $region35: #{tpu_custom_call.1} parent=1 // pred_check_branch
      %32 = sbr.rel (0) target = $region37
    $region36: #{tpu_custom_call.1} parent=1 // pred_region
      _
    $region37: #{tpu_custom_call.1} parent=1 // pred_fallthru
      _
    %v33 = vld [vmem:[%s0] sm:$0x3f]
    %v34 = vld [vmem:[%s1] sm:$0xff]
    %v35 = vld [vmem:[%s1 + $0x8] sm:$0xff]
    %v36 = vld [vmem:[%s1 + $0x10] sm:$0xff]
    %v37 = vld [vmem:[%s1 + $0x18] sm:$0xff]
    %v38 = vld [vmem:[%s2] sm:$0xff]
    %v39 = vld [vmem:[%s2 + $0x8] sm:$0xff]
    %v40 = vld [vmem:[%s2 + $0x10] sm:$0xff]
    %v41 = vld [vmem:[%s2 + $0x18] sm:$0xff]
    %43 = vset.pattern.permute.xlu0 0
    %44 = vperm.xlu0 %43, %v38
    %v45 = vpop.permute.xlu0 %44
    %48 = vset.pattern.permute.xlu0 0
    %49 = vperm.xlu0 %48, %v39
    %v50 = vpop.permute.xlu0 %49
    %53 = vset.pattern.permute.xlu0 0
    %54 = vperm.xlu0 %53, %v40
    %v55 = vpop.permute.xlu0 %54
    %58 = vset.pattern.permute.xlu0 0
    %59 = vperm.xlu0 %58, %v41
    %v60 = vpop.permute.xlu0 %59
    %vm62 = vcmask 48128
    %v64 = vsel %vm62, %v34, 0
    %v67 = vsel %vm62, %v35, 0
    %v70 = vsel %vm62, %v36, 0
    %v73 = vsel %vm62, %v37, 0
    %vm75 = vcmask 1045504
    %v77 = vsel %vm75, %v33, 0
    %79 = vmatprep.subr.mxu0 0.0
    %80 = vmatpush1.msra.mxu0 %v77
    %81 = vmatprep.subr.mxu0 0.0
    %82 = vmatpush1.msra.mxu0 0.0
    %83 = vmatprep.subr.mxu0 0.0
    %84 = vmatpush1.msra.mxu0 0.0
    %85 = vmatprep.subr.mxu0 0.0
    %86 = vmatpush1.msra.mxu0 0.0
    %87 = vmatprep.subr.mxu0 0.0
    %88 = vmatpush1.msra.mxu0 0.0
    %89 = vmatprep.subr.mxu0 0.0
    %90 = vmatpush1.msra.mxu0 0.0
    %91 = vmatprep.subr.mxu0 0.0
    %92 = vmatpush1.msra.mxu0 0.0
    %93 = vmatprep.subr.mxu0 0.0
    %94 = vmatpush1.msra.mxu0 0.0
    %95 = vmatprep.subr.mxu0 0.0
    %96 = vmatpush1.msra.mxu0 0.0
    %97 = vmatprep.subr.mxu0 0.0
    %98 = vmatpush1.msra.mxu0 0.0
    %99 = vmatprep.subr.mxu0 0.0
    %100 = vmatpush1.msra.mxu0 0.0
    %101 = vmatprep.subr.mxu0 0.0
    %102 = vmatpush1.msra.mxu0 0.0
    %103 = vmatprep.subr.mxu0 0.0
    %104 = vmatpush1.msra.mxu0 0.0
    %105 = vmatprep.subr.mxu0 0.0
    %106 = vmatpush1.msra.mxu0 0.0
    %107 = vmatprep.subr.mxu0 0.0
    %108 = vmatpush1.msra.mxu0 0.0
    %109 = vmatprep.subr.mxu0 0.0
    %110 = vmatpush1.msra.mxu0 0.0
    %111 = vmatprep.subr.mxu0 0.0
    %112 = vmatpush1.msra.mxu0 0.0
    %113 = vmatprep.subr.mxu0 0.0
    %114 = vmatpush1.msra.mxu0 0.0
    %115 = vmatprep.subr.mxu0 0.0
    %116 = vmatpush1.msra.mxu0 0.0
    %117 = vmatprep.subr.mxu0 0.0
    %118 = vmatpush1.msra.mxu0 0.0
    %119 = vmatprep.subr.mxu0 0.0
    %120 = vmatpush1.msra.mxu0 0.0
    %121 = vmatprep.subr.mxu0 0.0
    %122 = vmatpush1.msra.mxu0 0.0
    %123 = vmatprep.subr.mxu0 0.0
    %124 = vmatpush1.msra.mxu0 0.0
    %125 = vmatprep.subr.mxu0 0.0
    %126 = vmatpush1.msra.mxu0 0.0
    %127 = vmatprep.subr.mxu0 0.0
    %128 = vmatpush1.msra.mxu0 0.0
    %129 = vmatprep.subr.mxu0 0.0
    %130 = vmatpush1.msra.mxu0 0.0
    %131 = vmatprep.subr.mxu0 0.0
    %132 = vmatpush1.msra.mxu0 0.0
    %133 = vmatprep.subr.mxu0 0.0
    %134 = vmatpush1.msra.mxu0 0.0
    %135 = vmatprep.subr.mxu0 0.0
    %136 = vmatpush1.msra.mxu0 0.0
    %137 = vmatprep.subr.mxu0 0.0
    %138 = vmatpush1.msra.mxu0 0.0
    %139 = vmatprep.subr.mxu0 0.0
    %140 = vmatpush1.msra.mxu0 0.0
    %141 = vmatprep.subr.mxu0 0.0
    %142 = vmatpush1.msra.mxu0 0.0
    %143 = vmatprep.mubr.f32.mxu0 0.0
    %144 = vmatmul.mubr.f32.gmra.mrb[0].mxu0 %v64
    %v145 = vpop.f32.mrb[0].mxu0
    %v146 = vadd.f32 %v45, %v145
    %v147 = vpop.f32.mrb[0].mxu0
    %148 = vmatprep.mubr.f32.mxu0 0.0
    %149 = vmatmul.mubr.f32.gmra.mrb[0].mxu0 %v67
    %v150 = vpop.f32.mrb[0].mxu0
    %v151 = vadd.f32 %v50, %v150
    %v152 = vpop.f32.mrb[0].mxu0
    %153 = vmatprep.mubr.f32.mxu0 0.0
    %154 = vmatmul.mubr.f32.gmra.mrb[0].mxu0 %v70
    %v155 = vpop.f32.mrb[0].mxu0
    %v156 = vadd.f32 %v55, %v155
    %v157 = vpop.f32.mrb[0].mxu0
    %158 = vmatprep.mubr.f32.mxu0 0.0
    %159 = vmatmul.mubr.f32.gmra.mrb[0].mxu0 %v73
    %v160 = vpop.f32.mrb[0].mxu0
    %v161 = vadd.f32 %v60, %v160
    %v162 = vpop.f32.mrb[0].mxu0
    %163 = vdwg.mxu0
    %v164 = vmax.f32 %v146, 0.0
    %v165 = vmax.f32 %v151, 0.0
    %v166 = vmax.f32 %v156, 0.0
    %v167 = vmax.f32 %v161, 0.0
    %v168 = vld [vmem:[%s3] sm:$0xff]
    %v169 = vld [vmem:[%s3 + $0x8] sm:$0xff]
    %v170 = vld [vmem:[%s3 + $0x10] sm:$0xff]
    %v171 = vld [vmem:[%s3 + $0x18] sm:$0xff]
    %v172 = vld [vmem:[%s3 + $0x20] sm:$0xff]
    %v173 = vld [vmem:[%s3 + $0x28] sm:$0xff]
    %v174 = vld [vmem:[%s3 + $0x30] sm:$0xff]
    %v175 = vld [vmem:[%s3 + $0x38] sm:$0xff]
    %v176 = vld [vmem:[%s4] sm:$0xff]
    %v177 = vld [vmem:[%s4 + $0x8] sm:$0xff]
    %v178 = vld [vmem:[%s4 + $0x10] sm:$0xff]
    %v179 = vld [vmem:[%s4 + $0x18] sm:$0xff]
    %v180 = vld [vmem:[%s4 + $0x20] sm:$0xff]
    %v181 = vld [vmem:[%s4 + $0x28] sm:$0xff]
    %v182 = vld [vmem:[%s4 + $0x30] sm:$0xff]
    %v183 = vld [vmem:[%s4 + $0x38] sm:$0xff]
    %185 = vset.pattern.permute.xlu0 0
    %186 = vperm.xlu0 %185, %v176
    %v187 = vpop.permute.xlu0 %186
    %190 = vset.pattern.permute.xlu0 0
    %191 = vperm.xlu0 %190, %v177
    %v192 = vpop.permute.xlu0 %191
    %195 = vset.pattern.permute.xlu0 0
    %196 = vperm.xlu0 %195, %v178
    %v197 = vpop.permute.xlu0 %196
    %200 = vset.pattern.permute.xlu0 0
    %201 = vperm.xlu0 %200, %v179
    %v202 = vpop.permute.xlu0 %201
    %205 = vset.pattern.permute.xlu0 0
    %206 = vperm.xlu0 %205, %v180
    %v207 = vpop.permute.xlu0 %206
    %210 = vset.pattern.permute.xlu0 0
    %211 = vperm.xlu0 %210, %v181
    %v212 = vpop.permute.xlu0 %211
    %215 = vset.pattern.permute.xlu0 0
    %216 = vperm.xlu0 %215, %v182
    %v217 = vpop.permute.xlu0 %216
    %220 = vset.pattern.permute.xlu0 0
    %221 = vperm.xlu0 %220, %v183
    %v222 = vpop.permute.xlu0 %221
    %vm224 = vcmask 261120
    %v226 = vsel %vm224, %v168, 0
    %v229 = vsel %vm224, %v169, 0
    %v232 = vsel %vm224, %v170, 0
    %v235 = vsel %vm224, %v171, 0
    %v238 = vsel %vm224, %v172, 0
    %v241 = vsel %vm224, %v173, 0
    %v244 = vsel %vm224, %v174, 0
    %v247 = vsel %vm224, %v175, 0
    %249 = vmatprep.subr.mxu0 0.0
    %250 = vmatpush1.msra.mxu0 %v164
    %251 = vmatprep.subr.mxu0 0.0
    %252 = vmatpush1.msra.mxu0 %v165
    %253 = vmatprep.subr.mxu0 0.0
    %254 = vmatpush1.msra.mxu0 %v166
    %255 = vmatprep.subr.mxu0 0.0
    %256 = vmatpush1.msra.mxu0 %v167
    %257 = vmatprep.subr.mxu0 0.0
    %258 = vmatpush1.msra.mxu0 0.0
    %259 = vmatprep.subr.mxu0 0.0
    %260 = vmatpush1.msra.mxu0 0.0
    %261 = vmatprep.subr.mxu0 0.0
    %262 = vmatpush1.msra.mxu0 0.0
    %263 = vmatprep.subr.mxu0 0.0
    %264 = vmatpush1.msra.mxu0 0.0
    %265 = vmatprep.subr.mxu0 0.0
    %266 = vmatpush1.msra.mxu0 0.0
    %267 = vmatprep.subr.mxu0 0.0
    %268 = vmatpush1.msra.mxu0 0.0
    %269 = vmatprep.subr.mxu0 0.0
    %270 = vmatpush1.msra.mxu0 0.0
    %271 = vmatprep.subr.mxu0 0.0
    %272 = vmatpush1.msra.mxu0 0.0
    %273 = vmatprep.subr.mxu0 0.0
    %274 = vmatpush1.msra.mxu0 0.0
    %275 = vmatprep.subr.mxu0 0.0
    %276 = vmatpush1.msra.mxu0 0.0
    %277 = vmatprep.subr.mxu0 0.0
    %278 = vmatpush1.msra.mxu0 0.0
    %279 = vmatprep.subr.mxu0 0.0
    %280 = vmatpush1.msra.mxu0 0.0
    %281 = vmatprep.subr.mxu0 0.0
    %282 = vmatpush1.msra.mxu0 0.0
    %283 = vmatprep.subr.mxu0 0.0
    %284 = vmatpush1.msra.mxu0 0.0
    %285 = vmatprep.subr.mxu0 0.0
    %286 = vmatpush1.msra.mxu0 0.0
    %287 = vmatprep.subr.mxu0 0.0
    %288 = vmatpush1.msra.mxu0 0.0
    %289 = vmatprep.subr.mxu0 0.0
    %290 = vmatpush1.msra.mxu0 0.0
    %291 = vmatprep.subr.mxu0 0.0
    %292 = vmatpush1.msra.mxu0 0.0
    %293 = vmatprep.subr.mxu0 0.0
    %294 = vmatpush1.msra.mxu0 0.0
    %295 = vmatprep.subr.mxu0 0.0
    %296 = vmatpush1.msra.mxu0 0.0
    %297 = vmatprep.subr.mxu0 0.0
    %298 = vmatpush1.msra.mxu0 0.0
    %299 = vmatprep.subr.mxu0 0.0
    %300 = vmatpush1.msra.mxu0 0.0
    %301 = vmatprep.subr.mxu0 0.0
    %302 = vmatpush1.msra.mxu0 0.0
    %303 = vmatprep.subr.mxu0 0.0
    %304 = vmatpush1.msra.mxu0 0.0
    %305 = vmatprep.subr.mxu0 0.0
    %306 = vmatpush1.msra.mxu0 0.0
    %307 = vmatprep.subr.mxu0 0.0
    %308 = vmatpush1.msra.mxu0 0.0
    %309 = vmatprep.subr.mxu0 0.0
    %310 = vmatpush1.msra.mxu0 0.0
    %311 = vmatprep.subr.mxu0 0.0
    %312 = vmatpush1.msra.mxu0 0.0
    %313 = vmatprep.mubr.f32.mxu0 0.0
    %314 = vmatmul.mubr.f32.gmra.mrb[0].mxu0 %v226
    %v315 = vpop.f32.mrb[0].mxu0
    %v316 = vadd.f32 %v187, %v315
    %v317 = vpop.f32.mrb[0].mxu0
    %318 = vmatprep.mubr.f32.mxu0 0.0
    %319 = vmatmul.mubr.f32.gmra.mrb[0].mxu0 %v229
    %v320 = vpop.f32.mrb[0].mxu0
    %v321 = vadd.f32 %v192, %v320
    %v322 = vpop.f32.mrb[0].mxu0
    %323 = vmatprep.mubr.f32.mxu0 0.0
    %324 = vmatmul.mubr.f32.gmra.mrb[0].mxu0 %v232
    %v325 = vpop.f32.mrb[0].mxu0
    %v326 = vadd.f32 %v197, %v325
    %v327 = vpop.f32.mrb[0].mxu0
    %328 = vmatprep.mubr.f32.mxu0 0.0
    %329 = vmatmul.mubr.f32.gmra.mrb[0].mxu0 %v235
    %v330 = vpop.f32.mrb[0].mxu0
    %v331 = vadd.f32 %v202, %v330
    %v332 = vpop.f32.mrb[0].mxu0
    %333 = vmatprep.mubr.f32.mxu0 0.0
    %334 = vmatmul.mubr.f32.gmra.mrb[0].mxu0 %v238
    %v335 = vpop.f32.mrb[0].mxu0
    %v336 = vadd.f32 %v207, %v335
    %v337 = vpop.f32.mrb[0].mxu0
    %338 = vmatprep.mubr.f32.mxu0 0.0
    %339 = vmatmul.mubr.f32.gmra.mrb[0].mxu0 %v241
    %v340 = vpop.f32.mrb[0].mxu0
    %v341 = vadd.f32 %v212, %v340
    %v342 = vpop.f32.mrb[0].mxu0
    %343 = vmatprep.mubr.f32.mxu0 0.0
    %344 = vmatmul.mubr.f32.gmra.mrb[0].mxu0 %v244
    %v345 = vpop.f32.mrb[0].mxu0
    %v346 = vadd.f32 %v217, %v345
    %v347 = vpop.f32.mrb[0].mxu0
    %348 = vmatprep.mubr.f32.mxu0 0.0
    %349 = vmatmul.mubr.f32.gmra.mrb[0].mxu0 %v247
    %v350 = vpop.f32.mrb[0].mxu0
    %v351 = vadd.f32 %v222, %v350
    %v352 = vpop.f32.mrb[0].mxu0
    %353 = vdwg.mxu0
    %v354 = vmax.f32 %v316, 0.0
    %v355 = vmax.f32 %v321, 0.0
    %v356 = vmax.f32 %v326, 0.0
    %v357 = vmax.f32 %v331, 0.0
    %v358 = vmax.f32 %v336, 0.0
    %v359 = vmax.f32 %v341, 0.0
    %v360 = vmax.f32 %v346, 0.0
    %v361 = vmax.f32 %v351, 0.0
    %v362 = vld [vmem:[%s5] sm:$0xff]
    %v363 = vld [vmem:[%s5 + $0x8] sm:$0xff]
    %v364 = vld [vmem:[%s5 + $0x10] sm:$0xff]
    %v365 = vld [vmem:[%s5 + $0x18] sm:$0xff]
    %v366 = vld [vmem:[%s6] sm:$0xff]
    %v367 = vld [vmem:[%s6 + $0x8] sm:$0xff]
    %v368 = vld [vmem:[%s6 + $0x10] sm:$0xff]
    %v369 = vld [vmem:[%s6 + $0x18] sm:$0xff]
    %371 = vset.pattern.permute.xlu0 0
    %372 = vperm.xlu0 %371, %v366
    %v373 = vpop.permute.xlu0 %372
    %376 = vset.pattern.permute.xlu0 0
    %377 = vperm.xlu0 %376, %v367
    %v378 = vpop.permute.xlu0 %377
    %381 = vset.pattern.permute.xlu0 0
    %382 = vperm.xlu0 %381, %v368
    %v383 = vpop.permute.xlu0 %382
    %386 = vset.pattern.permute.xlu0 0
    %387 = vperm.xlu0 %386, %v369
    %v388 = vpop.permute.xlu0 %387
    %vm390 = vcmask 523264
    %v392 = vsel %vm390, %v362, 0
    %v395 = vsel %vm390, %v363, 0
    %v398 = vsel %vm390, %v364, 0
    %v401 = vsel %vm390, %v365, 0
    %403 = vmatprep.subr.mxu0 0.0
    %404 = vmatpush1.msra.mxu0 %v354
    %405 = vmatprep.subr.mxu0 0.0
    %406 = vmatpush1.msra.mxu0 %v355
    %407 = vmatprep.subr.mxu0 0.0
    %408 = vmatpush1.msra.mxu0 %v356
    %409 = vmatprep.subr.mxu0 0.0
    %410 = vmatpush1.msra.mxu0 %v357
    %411 = vmatprep.subr.mxu0 0.0
    %412 = vmatpush1.msra.mxu0 %v358
    %413 = vmatprep.subr.mxu0 0.0
    %414 = vmatpush1.msra.mxu0 %v359
    %415 = vmatprep.subr.mxu0 0.0
    %416 = vmatpush1.msra.mxu0 %v360
    %417 = vmatprep.subr.mxu0 0.0
    %418 = vmatpush1.msra.mxu0 %v361
    %419 = vmatprep.subr.mxu0 0.0
    %420 = vmatpush1.msra.mxu0 0.0
    %421 = vmatprep.subr.mxu0 0.0
    %422 = vmatpush1.msra.mxu0 0.0
    %423 = vmatprep.subr.mxu0 0.0
    %424 = vmatpush1.msra.mxu0 0.0
    %425 = vmatprep.subr.mxu0 0.0
    %426 = vmatpush1.msra.mxu0 0.0
    %427 = vmatprep.subr.mxu0 0.0
    %428 = vmatpush1.msra.mxu0 0.0
    %429 = vmatprep.subr.mxu0 0.0
    %430 = vmatpush1.msra.mxu0 0.0
    %431 = vmatprep.subr.mxu0 0.0
    %432 = vmatpush1.msra.mxu0 0.0
    %433 = vmatprep.subr.mxu0 0.0
    %434 = vmatpush1.msra.mxu0 0.0
    %435 = vmatprep.subr.mxu0 0.0
    %436 = vmatpush1.msra.mxu0 0.0
    %437 = vmatprep.subr.mxu0 0.0
    %438 = vmatpush1.msra.mxu0 0.0
    %439 = vmatprep.subr.mxu0 0.0
    %440 = vmatpush1.msra.mxu0 0.0
    %441 = vmatprep.subr.mxu0 0.0
    %442 = vmatpush1.msra.mxu0 0.0
    %443 = vmatprep.subr.mxu0 0.0
    %444 = vmatpush1.msra.mxu0 0.0
    %445 = vmatprep.subr.mxu0 0.0
    %446 = vmatpush1.msra.mxu0 0.0
    %447 = vmatprep.subr.mxu0 0.0
    %448 = vmatpush1.msra.mxu0 0.0
    %449 = vmatprep.subr.mxu0 0.0
    %450 = vmatpush1.msra.mxu0 0.0
    %451 = vmatprep.subr.mxu0 0.0
    %452 = vmatpush1.msra.mxu0 0.0
    %453 = vmatprep.subr.mxu0 0.0
    %454 = vmatpush1.msra.mxu0 0.0
    %455 = vmatprep.subr.mxu0 0.0
    %456 = vmatpush1.msra.mxu0 0.0
    %457 = vmatprep.subr.mxu0 0.0
    %458 = vmatpush1.msra.mxu0 0.0
    %459 = vmatprep.subr.mxu0 0.0
    %460 = vmatpush1.msra.mxu0 0.0
    %461 = vmatprep.subr.mxu0 0.0
    %462 = vmatpush1.msra.mxu0 0.0
    %463 = vmatprep.subr.mxu0 0.0
    %464 = vmatpush1.msra.mxu0 0.0
    %465 = vmatprep.subr.mxu0 0.0
    %466 = vmatpush1.msra.mxu0 0.0
    %467 = vmatprep.mubr.f32.mxu0 0.0
    %468 = vmatmul.mubr.f32.gmra.mrb[0].mxu0 %v392
    %v469 = vpop.f32.mrb[0].mxu0
    %v470 = vadd.f32 %v373, %v469
    %v471 = vpop.f32.mrb[0].mxu0
    %472 = vmatprep.mubr.f32.mxu0 0.0
    %473 = vmatmul.mubr.f32.gmra.mrb[0].mxu0 %v395
    %v474 = vpop.f32.mrb[0].mxu0
    %v475 = vadd.f32 %v378, %v474
    %v476 = vpop.f32.mrb[0].mxu0
    %477 = vmatprep.mubr.f32.mxu0 0.0
    %478 = vmatmul.mubr.f32.gmra.mrb[0].mxu0 %v398
    %v479 = vpop.f32.mrb[0].mxu0
    %v480 = vadd.f32 %v383, %v479
    %v481 = vpop.f32.mrb[0].mxu0
    %482 = vmatprep.mubr.f32.mxu0 0.0
    %483 = vmatmul.mubr.f32.gmra.mrb[0].mxu0 %v401
    %v484 = vpop.f32.mrb[0].mxu0
    %v485 = vadd.f32 %v388, %v484
    %v486 = vpop.f32.mrb[0].mxu0
    %487 = vdwg.mxu0
    %v488 = vmax.f32 %v470, 0.0
    %v489 = vmax.f32 %v475, 0.0
    %v490 = vmax.f32 %v480, 0.0
    %v491 = vmax.f32 %v485, 0.0
    %v492 = vld [vmem:[%s7] sm:$0x3f]
    %v493 = vld [vmem:[%s8] sm:$0x3f]
    %495 = vset.pattern.permute.xlu0 0
    %496 = vperm.xlu0 %495, %v493
    %v497 = vpop.permute.xlu0 %496
    %v500 = vsel %vm224, %v492, 0
    %502 = vmatprep.subr.mxu0 0.0
    %503 = vmatpush1.msra.mxu0 %v488
    %504 = vmatprep.subr.mxu0 0.0
    %505 = vmatpush1.msra.mxu0 %v489
    %506 = vmatprep.subr.mxu0 0.0
    %507 = vmatpush1.msra.mxu0 %v490
    %508 = vmatprep.subr.mxu0 0.0
    %509 = vmatpush1.msra.mxu0 %v491
    %510 = vmatprep.subr.mxu0 0.0
    %511 = vmatpush1.msra.mxu0 0.0
    %512 = vmatprep.subr.mxu0 0.0
    %513 = vmatpush1.msra.mxu0 0.0
    %514 = vmatprep.subr.mxu0 0.0
    %515 = vmatpush1.msra.mxu0 0.0
    %516 = vmatprep.subr.mxu0 0.0
    %517 = vmatpush1.msra.mxu0 0.0
    %518 = vmatprep.subr.mxu0 0.0
    %519 = vmatpush1.msra.mxu0 0.0
    %520 = vmatprep.subr.mxu0 0.0
    %521 = vmatpush1.msra.mxu0 0.0
    %522 = vmatprep.subr.mxu0 0.0
    %523 = vmatpush1.msra.mxu0 0.0
    %524 = vmatprep.subr.mxu0 0.0
    %525 = vmatpush1.msra.mxu0 0.0
    %526 = vmatprep.subr.mxu0 0.0
    %527 = vmatpush1.msra.mxu0 0.0
    %528 = vmatprep.subr.mxu0 0.0
    %529 = vmatpush1.msra.mxu0 0.0
    %530 = vmatprep.subr.mxu0 0.0
    %531 = vmatpush1.msra.mxu0 0.0
    %532 = vmatprep.subr.mxu0 0.0
    %533 = vmatpush1.msra.mxu0 0.0
    %534 = vmatprep.subr.mxu0 0.0
    %535 = vmatpush1.msra.mxu0 0.0
    %536 = vmatprep.subr.mxu0 0.0
    %537 = vmatpush1.msra.mxu0 0.0
    %538 = vmatprep.subr.mxu0 0.0
    %539 = vmatpush1.msra.mxu0 0.0
    %540 = vmatprep.subr.mxu0 0.0
    %541 = vmatpush1.msra.mxu0 0.0
    %542 = vmatprep.subr.mxu0 0.0
    %543 = vmatpush1.msra.mxu0 0.0
    %544 = vmatprep.subr.mxu0 0.0
    %545 = vmatpush1.msra.mxu0 0.0
    %546 = vmatprep.subr.mxu0 0.0
    %547 = vmatpush1.msra.mxu0 0.0
    %548 = vmatprep.subr.mxu0 0.0
    %549 = vmatpush1.msra.mxu0 0.0
    %550 = vmatprep.subr.mxu0 0.0
    %551 = vmatpush1.msra.mxu0 0.0
    %552 = vmatprep.subr.mxu0 0.0
    %553 = vmatpush1.msra.mxu0 0.0
    %554 = vmatprep.subr.mxu0 0.0
    %555 = vmatpush1.msra.mxu0 0.0
    %556 = vmatprep.subr.mxu0 0.0
    %557 = vmatpush1.msra.mxu0 0.0
    %558 = vmatprep.subr.mxu0 0.0
    %559 = vmatpush1.msra.mxu0 0.0
    %560 = vmatprep.subr.mxu0 0.0
    %561 = vmatpush1.msra.mxu0 0.0
    %562 = vmatprep.subr.mxu0 0.0
    %563 = vmatpush1.msra.mxu0 0.0
    %564 = vmatprep.subr.mxu0 0.0
    %565 = vmatpush1.msra.mxu0 0.0
    %566 = vmatprep.mubr.f32.mxu0 0.0
    %567 = vmatmul.mubr.f32.gmra.mrb[0].mxu0 %v500
    %v568 = vpop.f32.mrb[0].mxu0
    %v569 = vadd.f32 %v497, %v568
    %v570 = vpop.f32.mrb[0].mxu0
    %571 = vdwg.mxu0
    %572 = vst [vmem:[#allocation2] sm:$0x3f] %v569
    // Predicated region
    $region38: #{tpu_custom_call.1} parent=1 // pred_check
      _
    $region39: #{tpu_custom_call.1} parent=1 // pred_check_branch
      %574 = sbr.rel (0) target = $region41
    $region40: #{tpu_custom_call.1} parent=1 // pred_region
      %s576 = ssub.s32 128, 128
      %577 = vsyncadd [#allocation3], %s576
      %s579 = sshll.u32 [#allocation2], 4
      %s580 = int_to_ptr.vmem [resolvable:$true] %s579
      %582 = dma.vmem_to_hbm [thread:$0]  %s580, 128, %s9, [#allocation3]
    $region41: #{tpu_custom_call.1} parent=1 // pred_fallthru
      _
    // Predicated region
    $region42: #{tpu_custom_call.1} parent=1 // pred_check
      _
    $region43: #{tpu_custom_call.1} parent=1 // pred_check_branch
      %584 = sbr.rel (0) target = $region45
    $region44: #{tpu_custom_call.1} parent=1 // pred_region
      %585 = dma.done [#allocation3], 128
    $region45: #{tpu_custom_call.1} parent=1 // pred_fallthru
      _
    %586 = vsyncpa [#allocation3], 1

</llo_original>
